<compile_context>
chip_gen: v7x
topology: tpu7x:2x2x1
jax: 0.10.0
libtpu: 0.0.40
codegen_flags: <defaults>
</compile_context>

<pallas_src>
import functools
import math

import jax
import jax.numpy as jnp
from jax import lax
from jax.experimental import pallas as pl
from jax.experimental.pallas import tpu as pltpu

TAU = 0.25
VTH = 0.2

_MAX_BLOCK_BYTES = 2 << 20      # ~2 MiB f32 output block per grid step
_CHUNK_ELEMS = 64 * 128         # inner-loop tile: 8 vregs per live f32 array


def _cdiv(a, b):
    return -(-a // b)


def _round_up(a, b):
    return _cdiv(a, b) * b


def _lif_kernel(T, chunk_rows, vth_ref, x_ref, o_ref):
    # x_ref: (block_rows, lanes) input tile in the caller's dtype.
    # o_ref: (block_rows, lanes) f32 spike tile.
    # vth_ref: (1,) f32 scalar-prefetch operand in SMEM.
    vth = vth_ref[0]
    lanes = x_ref.shape[1]

    # Which timestep each lane holds (lane index mod T), built once per block.
    lane_idx = lax.broadcasted_iota(jnp.int32, (1, lanes), 1)
    if T & (T - 1) == 0:                       # power-of-two T (common case)
        tpos = lane_idx & (T - 1)
    else:
        tpos = lane_idx % T
    # Hoisted per-timestep masks (loop-invariant; sublane-broadcast at use).
    step_masks = [tpos == t for t in range(1, T)]

    n_chunks = x_ref.shape[0] // chunk_rows

    def chunk_body(c, carry):
        r0 = pl.multiple_of(c * chunk_rows, chunk_rows)
        x = x_ref[pl.ds(r0, chunk_rows), :].astype(jnp.float32)   # dense load + in-reg cast

        # Lane-domain scan: after step t, lanes at position t within their
        # T-group hold the final membrane potential u_t.
        u = x                                        # u_0 = x_0 on position-0 lanes
        for t in range(1, T):                        # static T -> fully unrolled
            u_prev = pltpu.roll(u, shift=1, axis=1)  # u_prev[:, j] = u[:, j-1]  (XLU)
            # u_t = tau*u_{t-1}*(1 - o_{t-1}) + x_t,  o_{t-1} = (u_{t-1} > Vth)
            cand = jnp.where(u_prev > vth, x, TAU * u_prev + x)
            u = jnp.where(step_masks[t - 1], cand, u)

        o_ref[pl.ds(r0, chunk_rows), :] = (u > vth).astype(o_ref.dtype)
        return carry

    lax.fori_loop(0, n_chunks, chunk_body, 0)


@jax.jit
def my_lif_spike(x, vth):
    """LIF spiking forward pass.  x: (..., T), vth: scalar.  Returns f32 spikes."""
    orig_shape = x.shape
    T = int(orig_shape[-1])
    total = int(x.size)

    # Lane width: multiple of 128 (full vreg lanes) and of T (a pixel's time
    # series never straddles a row boundary) -> lcm(T, 128).
    lanes = (T * 128) // math.gcd(T, 128)

    m = _cdiv(total, lanes)                          # rows of the 2D view
    chunk_rows = max(8, min((_CHUNK_ELEMS // lanes) // 8 * 8, _round_up(m, 8)))

    pad = m * lanes - total                          # 0 in the common case
    if pad:
        # Rare fallback (numel not a multiple of lcm(T,128)): one small pad copy.
        x2 = jnp.pad(x.reshape(-1), (0, pad)).reshape(m, lanes)
    else:
        x2 = x.reshape(m, lanes)                     # free reinterpretation (native order)

    # Block/grid sizing: big lane-dense blocks; grid forced even and >= 2 when
    # possible so both v7x TensorCores get work; last block may be partial.
    max_br = max(chunk_rows,
                 (_MAX_BLOCK_BYTES // (lanes * 4)) // chunk_rows * chunk_rows)
    g = max(1, _cdiv(m, max_br))
    if m >= 2 * chunk_rows:
        g = max(g, 2)
    if g > 1 and g % 2:
        g += 1
    br = max(chunk_rows, _round_up(_cdiv(m, g), chunk_rows))
    g = _cdiv(m, br)

    vth_arr = jnp.asarray(vth, jnp.float32).reshape((1,))

    out2 = pl.pallas_call(
        functools.partial(_lif_kernel, T, chunk_rows),
        out_shape=jax.ShapeDtypeStruct((m, lanes), jnp.float32),
        grid_spec=pltpu.PrefetchScalarGridSpec(
            num_scalar_prefetch=1,
            grid=(g,),
            in_specs=[pl.BlockSpec((br, lanes), lambda i, vth_r: (i, 0))],
            out_specs=pl.BlockSpec((br, lanes), lambda i, vth_r: (i, 0)),
        ),
        compiler_params=pltpu.CompilerParams(
            dimension_semantics=("parallel",),
            vmem_limit_bytes=32 * 1024 * 1024,
        ),
    )(vth_arr, x2)

    if pad:
        return out2.reshape(-1)[:total].reshape(orig_shape)
    return out2.reshape(orig_shape)


def _reference(x, vth):
    """Pure-JAX reference of the PyTorch loop (verification only)."""
    T = x.shape[-1]
    u = jnp.zeros(x.shape[:-1], jnp.float32)
    o = jnp.zeros(x.shape[:-1], jnp.float32)
    outs = []
    for t in range(T):
        u = TAU * u * (1.0 - o) + x[..., t].astype(jnp.float32)
        o = (u > vth).astype(jnp.float32)
        outs.append(o)
    return jnp.stack(outs, axis=-1)


# TODO(synk): only the forward pass is implemented; the surrogate-gradient
# backward of MySpikeAct (rectangular window / (2*aa)) is a training-time
# custom VJP and is not part of this kernel.

if __name__ == "__main__":
    key = jax.random.PRNGKey(0)

    # Main demo: NCHW + time (last dim), as in the module.
    B, C, H, W, T = 2, 4, 16, 16, 8
    x = jax.random.normal(key, (B, C, H, W, T), dtype=jnp.float32) * 0.5

    out = my_lif_spike(x, VTH)
    out = jax.block_until_ready(out)
    ref = _reference(x, VTH)
    assert out.shape == x.shape
    assert out.dtype == jnp.float32
    assert bool(jnp.all(out == ref)), "Pallas kernel mismatch vs reference"

    # Ragged-shape check (exercises the partial-last-block + pad fallback path).
    x2 = jax.random.normal(jax.random.PRNGKey(1), (4, 3, 17, 17, 8),
                           dtype=jnp.float32) * 0.5
    out2 = jax.block_until_ready(my_lif_spike(x2, VTH))
    assert bool(jnp.all(out2 == _reference(x2, VTH))), "ragged-shape mismatch"

    print("KERNEL_OK")
</pallas_src>

<mosaic_0001>
module attributes {stable_mosaic.version = 11 : i64} {
  func.func @_lif_kernel(%arg0: i32, %arg1: memref<1xf32, #tpu.memory_space<smem>>, %arg2: memref<64x128xf32, #tpu.memory_space<vmem>>, %arg3: memref<64x128xf32, #tpu.memory_space<vmem>>) attributes {dimension_semantics = [#tpu.dimension_semantics<parallel>], iteration_bounds = array<i64: 2>, scalar_prefetch = 1 : i64, scratch_operands = 0 : i64, tpu.core_type = #tpu.core_type<tc>, window_params = [{transform_indices = @transform_0, window_bounds = array<i64: 64, 128>}, {transform_indices = @transform_1, window_bounds = array<i64: 64, 128>}]} {
    %c0 = arith.constant 0 : index
    %0 = memref.load %arg1[%c0] : memref<1xf32, #tpu.memory_space<smem>>
    %1 = tpu.iota {dimensions = array<i32: 1>} : vector<1x128xi32>
    %c7_i32 = arith.constant 7 : i32
    %2 = vector.broadcast %c7_i32 : i32 to vector<1x128xi32>
    %3 = arith.andi %1, %2 : vector<1x128xi32>
    %c1_i32 = arith.constant 1 : i32
    %4 = vector.broadcast %c1_i32 : i32 to vector<1x128xi32>
    %5 = arith.cmpi eq, %3, %4 : vector<1x128xi32>
    %c2_i32 = arith.constant 2 : i32
    %6 = vector.broadcast %c2_i32 : i32 to vector<1x128xi32>
    %7 = arith.cmpi eq, %3, %6 : vector<1x128xi32>
    %c3_i32 = arith.constant 3 : i32
    %8 = vector.broadcast %c3_i32 : i32 to vector<1x128xi32>
    %9 = arith.cmpi eq, %3, %8 : vector<1x128xi32>
    %c4_i32 = arith.constant 4 : i32
    %10 = vector.broadcast %c4_i32 : i32 to vector<1x128xi32>
    %11 = arith.cmpi eq, %3, %10 : vector<1x128xi32>
    %c5_i32 = arith.constant 5 : i32
    %12 = vector.broadcast %c5_i32 : i32 to vector<1x128xi32>
    %13 = arith.cmpi eq, %3, %12 : vector<1x128xi32>
    %c6_i32 = arith.constant 6 : i32
    %14 = vector.broadcast %c6_i32 : i32 to vector<1x128xi32>
    %15 = arith.cmpi eq, %3, %14 : vector<1x128xi32>
    %c7_i32_0 = arith.constant 7 : i32
    %16 = vector.broadcast %c7_i32_0 : i32 to vector<1x128xi32>
    %17 = arith.cmpi eq, %3, %16 : vector<1x128xi32>
    %c0_i32 = arith.constant 0 : i32
    %c64_i32 = arith.constant 64 : i32
    %18 = arith.muli %c0_i32, %c64_i32 : i32
    %19 = tpu.assume_multiple %18, 64 : i32
    %20 = arith.index_cast %19 : i32 to index
    %c0_1 = arith.constant 0 : index
    %21 = vector.load %arg2[%20, %c0_1] : memref<64x128xf32, #tpu.memory_space<vmem>>, vector<64x128xf32>
    %c1_i32_2 = arith.constant 1 : i32
    %22 = tpu.dynamic_rotate %21 by %c1_i32_2 dim 1 : vector<64x128xf32>, i32 -> vector<64x128xf32>
    %23 = vector.broadcast %0 : f32 to vector<64x128xf32>
    %24 = arith.cmpf ogt, %22, %23 : vector<64x128xf32>
    %cst = arith.constant 2.500000e-01 : f32
    %25 = vector.broadcast %cst : f32 to vector<64x128xf32>
    %26 = arith.mulf %25, %22 : vector<64x128xf32>
    %27 = arith.addf %26, %21 : vector<64x128xf32>
    %28 = arith.select %24, %21, %27 : vector<64x128xi1>, vector<64x128xf32>
    %29 = vector.shape_cast %5 : vector<1x128xi1> to vector<1x128xi1>
    %30 = vector.broadcast %29 : vector<1x128xi1> to vector<64x128xi1>
    %31 = arith.select %30, %28, %21 : vector<64x128xi1>, vector<64x128xf32>
    %c1_i32_3 = arith.constant 1 : i32
    %32 = tpu.dynamic_rotate %31 by %c1_i32_3 dim 1 : vector<64x128xf32>, i32 -> vector<64x128xf32>
    %33 = vector.broadcast %0 : f32 to vector<64x128xf32>
    %34 = arith.cmpf ogt, %32, %33 : vector<64x128xf32>
    %cst_4 = arith.constant 2.500000e-01 : f32
    %35 = vector.broadcast %cst_4 : f32 to vector<64x128xf32>
    %36 = arith.mulf %35, %32 : vector<64x128xf32>
    %37 = arith.addf %36, %21 : vector<64x128xf32>
    %38 = arith.select %34, %21, %37 : vector<64x128xi1>, vector<64x128xf32>
    %39 = vector.shape_cast %7 : vector<1x128xi1> to vector<1x128xi1>
    %40 = vector.broadcast %39 : vector<1x128xi1> to vector<64x128xi1>
    %41 = arith.select %40, %38, %31 : vector<64x128xi1>, vector<64x128xf32>
    %c1_i32_5 = arith.constant 1 : i32
    %42 = tpu.dynamic_rotate %41 by %c1_i32_5 dim 1 : vector<64x128xf32>, i32 -> vector<64x128xf32>
    %43 = vector.broadcast %0 : f32 to vector<64x128xf32>
    %44 = arith.cmpf ogt, %42, %43 : vector<64x128xf32>
    %cst_6 = arith.constant 2.500000e-01 : f32
    %45 = vector.broadcast %cst_6 : f32 to vector<64x128xf32>
    %46 = arith.mulf %45, %42 : vector<64x128xf32>
    %47 = arith.addf %46, %21 : vector<64x128xf32>
    %48 = arith.select %44, %21, %47 : vector<64x128xi1>, vector<64x128xf32>
    %49 = vector.shape_cast %9 : vector<1x128xi1> to vector<1x128xi1>
    %50 = vector.broadcast %49 : vector<1x128xi1> to vector<64x128xi1>
    %51 = arith.select %50, %48, %41 : vector<64x128xi1>, vector<64x128xf32>
    %c1_i32_7 = arith.constant 1 : i32
    %52 = tpu.dynamic_rotate %51 by %c1_i32_7 dim 1 : vector<64x128xf32>, i32 -> vector<64x128xf32>
    %53 = vector.broadcast %0 : f32 to vector<64x128xf32>
    %54 = arith.cmpf ogt, %52, %53 : vector<64x128xf32>
    %cst_8 = arith.constant 2.500000e-01 : f32
    %55 = vector.broadcast %cst_8 : f32 to vector<64x128xf32>
    %56 = arith.mulf %55, %52 : vector<64x128xf32>
    %57 = arith.addf %56, %21 : vector<64x128xf32>
    %58 = arith.select %54, %21, %57 : vector<64x128xi1>, vector<64x128xf32>
    %59 = vector.shape_cast %11 : vector<1x128xi1> to vector<1x128xi1>
    %60 = vector.broadcast %59 : vector<1x128xi1> to vector<64x128xi1>
    %61 = arith.select %60, %58, %51 : vector<64x128xi1>, vector<64x128xf32>
    %c1_i32_9 = arith.constant 1 : i32
    %62 = tpu.dynamic_rotate %61 by %c1_i32_9 dim 1 : vector<64x128xf32>, i32 -> vector<64x128xf32>
    %63 = vector.broadcast %0 : f32 to vector<64x128xf32>
    %64 = arith.cmpf ogt, %62, %63 : vector<64x128xf32>
    %cst_10 = arith.constant 2.500000e-01 : f32
    %65 = vector.broadcast %cst_10 : f32 to vector<64x128xf32>
    %66 = arith.mulf %65, %62 : vector<64x128xf32>
    %67 = arith.addf %66, %21 : vector<64x128xf32>
    %68 = arith.select %64, %21, %67 : vector<64x128xi1>, vector<64x128xf32>
    %69 = vector.shape_cast %13 : vector<1x128xi1> to vector<1x128xi1>
    %70 = vector.broadcast %69 : vector<1x128xi1> to vector<64x128xi1>
    %71 = arith.select %70, %68, %61 : vector<64x128xi1>, vector<64x128xf32>
    %c1_i32_11 = arith.constant 1 : i32
    %72 = tpu.dynamic_rotate %71 by %c1_i32_11 dim 1 : vector<64x128xf32>, i32 -> vector<64x128xf32>
    %73 = vector.broadcast %0 : f32 to vector<64x128xf32>
    %74 = arith.cmpf ogt, %72, %73 : vector<64x128xf32>
    %cst_12 = arith.constant 2.500000e-01 : f32
    %75 = vector.broadcast %cst_12 : f32 to vector<64x128xf32>
    %76 = arith.mulf %75, %72 : vector<64x128xf32>
    %77 = arith.addf %76, %21 : vector<64x128xf32>
    %78 = arith.select %74, %21, %77 : vector<64x128xi1>, vector<64x128xf32>
    %79 = vector.shape_cast %15 : vector<1x128xi1> to vector<1x128xi1>
    %80 = vector.broadcast %79 : vector<1x128xi1> to vector<64x128xi1>
    %81 = arith.select %80, %78, %71 : vector<64x128xi1>, vector<64x128xf32>
    %c1_i32_13 = arith.constant 1 : i32
    %82 = tpu.dynamic_rotate %81 by %c1_i32_13 dim 1 : vector<64x128xf32>, i32 -> vector<64x128xf32>
    %83 = vector.broadcast %0 : f32 to vector<64x128xf32>
    %84 = arith.cmpf ogt, %82, %83 : vector<64x128xf32>
    %cst_14 = arith.constant 2.500000e-01 : f32
    %85 = vector.broadcast %cst_14 : f32 to vector<64x128xf32>
    %86 = arith.mulf %85, %82 : vector<64x128xf32>
    %87 = arith.addf %86, %21 : vector<64x128xf32>
    %88 = arith.select %84, %21, %87 : vector<64x128xi1>, vector<64x128xf32>
    %89 = vector.shape_cast %17 : vector<1x128xi1> to vector<1x128xi1>
    %90 = vector.broadcast %89 : vector<1x128xi1> to vector<64x128xi1>
    %91 = arith.select %90, %88, %81 : vector<64x128xi1>, vector<64x128xf32>
    %92 = vector.broadcast %0 : f32 to vector<64x128xf32>
    %93 = arith.cmpf ogt, %91, %92 : vector<64x128xf32>
    %94 = arith.extui %93 : vector<64x128xi1> to vector<64x128xi32>
    %95 = arith.sitofp %94 : vector<64x128xi32> to vector<64x128xf32>
    %96 = arith.index_cast %19 : i32 to index
    %c0_15 = arith.constant 0 : index
    %97 = vector.load %arg3[%96, %c0_15] : memref<64x128xf32, #tpu.memory_space<vmem>>, vector<64x128xf32>
    tpu.vector_store %arg3[%96, %c0_15], %95 {strides = array<i32>} : memref<64x128xf32, #tpu.memory_space<vmem>>, vector<64x128xf32>,
    %c1_i32_16 = arith.constant 1 : i32
    return
  }
  func.func @transform_0(%arg0: i32, %arg1: memref<1xf32, #tpu.memory_space<smem>>) -> (i32, i32) {
    %c0_i32 = arith.constant 0 : i32
    %c0_i32_0 = arith.constant 0 : i32
    return %arg0, %c0_i32 : i32, i32
  }
  func.func @transform_1(%arg0: i32, %arg1: memref<1xf32, #tpu.memory_space<smem>>) -> (i32, i32) {
    %c0_i32 = arith.constant 0 : i32
    %c0_i32_0 = arith.constant 0 : i32
    return %arg0, %c0_i32 : i32, i32
  }
}

</mosaic_0001>

<llo_original>
// kernel: my_lif_spike.1
$region0: #{my_lif_spike.1}
  #allocation0 [shape = 'u32[]', space=smem, size = 0x4, offset = 0x4, fixed_abs, tag = 'smem constant byte address 0x4 - core index']
  #allocation1 [shape = 'u32[144,128]{1,0:T(1,128)}', space=vmem, size = 0x12000, scoped, tag = 'internal scratch']
  #allocation2 [shape = 's32[1]{0}', space=sflag, size = 0x4, scoped, tag = 'scoped memory for my_lif_spike.1']
  #allocation3 [shape = 'f32[1]{0:T(128)S(6)}', space=smem, size = 0x200, scoped, tag = 'prefetched SMEM operand 0']
  %s0 = inlined_call_operand.<no memory space> [shape: f32[1], index: 0, kind: input, shape index: {}]
  %s1 = inlined_call_operand.vmem [shape: f32[128,128], index: 1, kind: input, shape index: {}]
  %s2 = inlined_call_operand.vmem [shape: f32[128,128], index: 2, kind: output, shape index: {}]
  %s3 = sld [smem:[#allocation0]]
  $region37: #{my_lif_spike.1} parent=0
    _
  %s5 = ssub.s32 1, %s3
  %s6 = scalar_select 0, %s5, %s3
  %7 = sst [smem:[#allocation3]] %s0
  loop: start=0, step=1, limit=4
  $region2: #{my_lif_spike.1} parent=0 // loop_pre_header
    _
  $region3: #{my_lif_spike.1} parent=0 // loop_header
    %s9 = sphi 0, %s13
    %p10 = scmp.ge.s32.totalorder %s9, 4
    %s19 = sphi 0, %s21
    %s22 = sphi 0, %s19
    %s23 = sphi 0, %s22
    %s39 = sphi 0, %s23
    %s45 = sphi 0, %s47
    %s48 = sphi 0, %s45
    %s49 = sphi 0, %s48
    %s65 = sphi 0, %s49
  $region4: #{my_lif_spike.1} parent=0 // loop_header_branch
    %12 = sbr.rel (%p10) target = $region8
  $region5: #{my_lif_spike.1} parent=0 // loop_body
    %s14 = ssub.s32 %s9, 1
    %s15 = ssub.s32 %s9, 2
    %s16 = sadd.s32 %s9, 1
    %s17 = ssub.s32 %s9, %s16
    %p18 = scmp.eq.s32.totalorder %s17, 0
    %s20 = sadd.s32 %s19, 1
    %s21 = scalar_select %p18, %s19, %s20
    %p24 = pneg %p18
    %p25 = scmp.eq.s32.totalorder %s9, 1
    %p26 = por %p24, %p25
    %p27 = scmp.ne.s32.totalorder %s19, %s22
    %p28 = scmp.eq.s32.totalorder %s9, 0
    %p29 = por %p27, %p28
    %p30 = scmp.ne.s32.totalorder %s19, %s22
    %p31 = scmp.eq.s32.totalorder %s14, 1
    %p32 = por %p30, %p31
    %p33 = scmp.ne.s32.totalorder %s22, %s23
    %p34 = scmp.eq.s32.totalorder %s14, 0
    %p35 = por %p33, %p34
    %p36 = scmp.ne.s32.totalorder %s22, %s23
    %p37 = scmp.eq.s32.totalorder %s15, 1
    %p38 = por %p36, %p37
    %p40 = scmp.ne.s32.totalorder %s23, %s39
    %p41 = scmp.eq.s32.totalorder %s15, 0
    %p42 = por %p40, %p41
    %s43 = ssub.s32 %s9, %s16
    %p44 = scmp.eq.s32.totalorder %s43, 0
    %s46 = sadd.s32 %s45, 1
    %s47 = scalar_select %p44, %s45, %s46
    %p50 = pneg %p44
    %p51 = scmp.eq.s32.totalorder %s9, 1
    %p52 = por %p50, %p51
    %p53 = scmp.ne.s32.totalorder %s45, %s48
    %p54 = scmp.eq.s32.totalorder %s9, 0
    %p55 = por %p53, %p54
    %p56 = scmp.ne.s32.totalorder %s45, %s48
    %p57 = scmp.eq.s32.totalorder %s14, 1
    %p58 = por %p56, %p57
    %p59 = scmp.ne.s32.totalorder %s48, %s49
    %p60 = scmp.eq.s32.totalorder %s14, 0
    %p61 = por %p59, %p60
    %p62 = scmp.ne.s32.totalorder %s48, %s49
    %p63 = scmp.eq.s32.totalorder %s15, 1
    %p64 = por %p62, %p63
    %p66 = scmp.ne.s32.totalorder %s49, %s65
    %p67 = scmp.eq.s32.totalorder %s15, 0
    %p68 = por %p66, %p67
    %p69 = scmp.le.s32.totalorder 1, %s9
    %p70 = scmp.lt.s32.totalorder %s9, 3
    %p71 = pnand %p69, %p70
    %p72 = pneg %p71
    // Predicated region
    $region9: #{my_lif_spike.1} parent=5 // pred_check
      _
    $region10: #{my_lif_spike.1} parent=5 // pred_check_branch
      %74 = sbr.rel (%p71) target = $region12
    $region11: #{my_lif_spike.1} parent=5 // pred_region
      %s75 = ssub.s32 %s9, 1
    $region12: #{my_lif_spike.1} parent=5 // pred_fallthru
      _
    %p76 = scmp.lt.s32.totalorder %s9, 2
    // Predicated region
    $region13: #{my_lif_spike.1} parent=5 // pred_check
      %p77 = pneg %p76
    $region14: #{my_lif_spike.1} parent=5 // pred_check_branch
      %79 = sbr.rel (%p77) target = $region16
    $region15: #{my_lif_spike.1} parent=5 // pred_region
      // Predicated region
      $region17: #{my_lif_spike.1} parent=15 // pred_check
        %p80 = pneg %p29
      $region18: #{my_lif_spike.1} parent=15 // pred_check_branch
        %82 = sbr.rel (%p80) target = $region20
      $region19: #{my_lif_spike.1} parent=15 // pred_region
        %s83 = smul.u32 8, %s9
        %p84 = scmp.lt.s32.totalorder %s83, 15
        %s85 = scalar_select %p84, %s83, 15
        %s86 = smul.addr %s85, 8
        %s87 = scalar_lea.vmem %s1, %s86
        %s88 = smul.u32 8, %s9
      $region20: #{my_lif_spike.1} parent=15 // pred_fallthru
        _
    $region16: #{my_lif_spike.1} parent=5 // pred_fallthru
      _
    %p89 = scmp.le.s32.totalorder 1, %s9
    %p90 = scmp.lt.s32.totalorder %s9, 3
    %p91 = pnand %p89, %p90
    %p92 = pneg %p91
    // Predicated region
    $region21: #{my_lif_spike.1} parent=5 // pred_check
      _
    $region22: #{my_lif_spike.1} parent=5 // pred_check_branch
      %94 = sbr.rel (%p91) target = $region24
    $region23: #{my_lif_spike.1} parent=5 // pred_region
      %s95 = ssub.s32 %s9, 1
      %s96 = smul.u32 8, %s14
      %p97 = scmp.lt.s32.totalorder %s96, 15
      %s98 = scalar_select %p97, %s96, 15
      %s99 = smul.addr %s98, 8
      %s100 = scalar_lea.vmem %s1, %s99
      %p101 = pneg %p35
      %p102 = pneg %p32
      %p103 = pneg %p61
      %p104 = pneg %p58
      %s105 = smul.u32 8, %s14
      %p106 = scmp.lt.s32.totalorder %s105, 15
      %s107 = scalar_select %p106, %s105, 15
      %s108 = smul.addr %s107, 8
      %s109 = scalar_lea.vmem %s2, %s108
      %s110 = smul.u32 8, %s14
      %p111 = scmp.lt.s32.totalorder %s110, 15
      %s112 = scalar_select %p111, %s110, 15
      %s113 = smul.addr %s112, 8
      %s114 = scalar_lea.vmem %s1, %s113
      %s115 = smul.u32 8, %s14
      %s116 = smul.u32 8, %s14
      %p117 = scmp.lt.s32.totalorder %s116, 15
      %s118 = scalar_select %p117, %s116, 15
      %s119 = smul.addr %s118, 8
      %s120 = scalar_lea.vmem %s2, %s119
      %s121 = smul.u32 8, %s14
      %s122 = sld [smem:[#allocation3]]
      %v123 = vlaneseq
      %v124 = vand.u32 %v123, 127
      %v125 = vand.u32 %v124, 7
      %vm126 = vcmp.eq.s32.totalorder %v125, 1
      %vm127 = vcmp.eq.s32.totalorder %v125, 2
      %vm128 = vcmp.eq.s32.totalorder %v125, 3
      %vm129 = vcmp.eq.s32.totalorder %v125, 4
      %vm130 = vcmp.eq.s32.totalorder %v125, 5
      %vm131 = vcmp.eq.s32.totalorder %v125, 6
      %vm132 = vcmp.eq.s32.totalorder %v125, 7
      %v133 = vld [vmem:[%s114] sm:$0xff]
      %v134 = vld [vmem:[%s114 + $0x8] sm:$0xff]
      %v135 = vld [vmem:[%s114 + $0x10] sm:$0xff]
      %v136 = vld [vmem:[%s114 + $0x18] sm:$0xff]
      %v137 = vld [vmem:[%s114 + $0x20] sm:$0xff]
      %v138 = vld [vmem:[%s114 + $0x28] sm:$0xff]
      %v139 = vld [vmem:[%s114 + $0x30] sm:$0xff]
      %v140 = vld [vmem:[%s114 + $0x38] sm:$0xff]
      %141 = vrot.lane.b32.xlu0 %v133, 1
      %v142 = vpop.permute.xlu0 %141
      %143 = vrot.lane.b32.xlu0 %v134, 1
      %v144 = vpop.permute.xlu0 %143
      %145 = vrot.lane.b32.xlu0 %v135, 1
      %v146 = vpop.permute.xlu0 %145
      %147 = vrot.lane.b32.xlu0 %v136, 1
      %v148 = vpop.permute.xlu0 %147
      %149 = vrot.lane.b32.xlu0 %v137, 1
      %v150 = vpop.permute.xlu0 %149
      %151 = vrot.lane.b32.xlu0 %v138, 1
      %v152 = vpop.permute.xlu0 %151
      %153 = vrot.lane.b32.xlu0 %v139, 1
      %v154 = vpop.permute.xlu0 %153
      %155 = vrot.lane.b32.xlu0 %v140, 1
      %v156 = vpop.permute.xlu0 %155
      %v157 = vstv %s122
      %vm158 = vcmp.gt.f32.partialorder %v142, %v157
      %vm159 = vcmp.gt.f32.partialorder %v144, %v157
      %vm160 = vcmp.gt.f32.partialorder %v146, %v157
      %vm161 = vcmp.gt.f32.partialorder %v148, %v157
      %vm162 = vcmp.gt.f32.partialorder %v150, %v157
      %vm163 = vcmp.gt.f32.partialorder %v152, %v157
      %vm164 = vcmp.gt.f32.partialorder %v154, %v157
      %vm165 = vcmp.gt.f32.partialorder %v156, %v157
      %v166 = vmul.f32 %v142, 0.25
      %v167 = vmul.f32 %v144, 0.25
      %v168 = vmul.f32 %v146, 0.25
      %v169 = vmul.f32 %v148, 0.25
      %v170 = vmul.f32 %v150, 0.25
      %v171 = vmul.f32 %v152, 0.25
      %v172 = vmul.f32 %v154, 0.25
      %v173 = vmul.f32 %v156, 0.25
      %v174 = vadd.f32 %v166, %v133
      %v175 = vadd.f32 %v167, %v134
      %v176 = vadd.f32 %v168, %v135
      %v177 = vadd.f32 %v169, %v136
      %v178 = vadd.f32 %v170, %v137
      %v179 = vadd.f32 %v171, %v138
      %v180 = vadd.f32 %v172, %v139
      %v181 = vadd.f32 %v173, %v140
      %v182 = vsel %vm158, %v133, %v174
      %v183 = vsel %vm159, %v134, %v175
      %v184 = vsel %vm160, %v135, %v176
      %v185 = vsel %vm161, %v136, %v177
      %v186 = vsel %vm162, %v137, %v178
      %v187 = vsel %vm163, %v138, %v179
      %v188 = vsel %vm164, %v139, %v180
      %v189 = vsel %vm165, %v140, %v181
      %v190 = vsel %vm126, 1, 0
      %vm191 = vcmp.eq.s32.totalorder %v190, 1
      %v192 = vsel %vm191, %v182, %v133
      %v193 = vsel %vm191, %v183, %v134
      %v194 = vsel %vm191, %v184, %v135
      %v195 = vsel %vm191, %v185, %v136
      %v196 = vsel %vm191, %v186, %v137
      %v197 = vsel %vm191, %v187, %v138
      %v198 = vsel %vm191, %v188, %v139
      %v199 = vsel %vm191, %v189, %v140
      %200 = vrot.lane.b32.xlu0 %v192, 1
      %v201 = vpop.permute.xlu0 %200
      %202 = vrot.lane.b32.xlu0 %v193, 1
      %v203 = vpop.permute.xlu0 %202
      %204 = vrot.lane.b32.xlu0 %v194, 1
      %v205 = vpop.permute.xlu0 %204
      %206 = vrot.lane.b32.xlu0 %v195, 1
      %v207 = vpop.permute.xlu0 %206
      %208 = vrot.lane.b32.xlu0 %v196, 1
      %v209 = vpop.permute.xlu0 %208
      %210 = vrot.lane.b32.xlu0 %v197, 1
      %v211 = vpop.permute.xlu0 %210
      %212 = vrot.lane.b32.xlu0 %v198, 1
      %v213 = vpop.permute.xlu0 %212
      %214 = vrot.lane.b32.xlu0 %v199, 1
      %v215 = vpop.permute.xlu0 %214
      %vm216 = vcmp.gt.f32.partialorder %v201, %v157
      %vm217 = vcmp.gt.f32.partialorder %v203, %v157
      %vm218 = vcmp.gt.f32.partialorder %v205, %v157
      %vm219 = vcmp.gt.f32.partialorder %v207, %v157
      %vm220 = vcmp.gt.f32.partialorder %v209, %v157
      %vm221 = vcmp.gt.f32.partialorder %v211, %v157
      %vm222 = vcmp.gt.f32.partialorder %v213, %v157
      %vm223 = vcmp.gt.f32.partialorder %v215, %v157
      %v224 = vmul.f32 %v201, 0.25
      %v225 = vmul.f32 %v203, 0.25
      %v226 = vmul.f32 %v205, 0.25
      %v227 = vmul.f32 %v207, 0.25
      %v228 = vmul.f32 %v209, 0.25
      %v229 = vmul.f32 %v211, 0.25
      %v230 = vmul.f32 %v213, 0.25
      %v231 = vmul.f32 %v215, 0.25
      %v232 = vadd.f32 %v224, %v133
      %v233 = vadd.f32 %v225, %v134
      %v234 = vadd.f32 %v226, %v135
      %v235 = vadd.f32 %v227, %v136
      %v236 = vadd.f32 %v228, %v137
      %v237 = vadd.f32 %v229, %v138
      %v238 = vadd.f32 %v230, %v139
      %v239 = vadd.f32 %v231, %v140
      %v240 = vsel %vm216, %v133, %v232
      %v241 = vsel %vm217, %v134, %v233
      %v242 = vsel %vm218, %v135, %v234
      %v243 = vsel %vm219, %v136, %v235
      %v244 = vsel %vm220, %v137, %v236
      %v245 = vsel %vm221, %v138, %v237
      %v246 = vsel %vm222, %v139, %v238
      %v247 = vsel %vm223, %v140, %v239
      %v248 = vsel %vm127, 1, 0
      %vm249 = vcmp.eq.s32.totalorder %v248, 1
      %v250 = vsel %vm249, %v240, %v192
      %v251 = vsel %vm249, %v241, %v193
      %v252 = vsel %vm249, %v242, %v194
      %v253 = vsel %vm249, %v243, %v195
      %v254 = vsel %vm249, %v244, %v196
      %v255 = vsel %vm249, %v245, %v197
      %v256 = vsel %vm249, %v246, %v198
      %v257 = vsel %vm249, %v247, %v199
      %258 = vrot.lane.b32.xlu0 %v250, 1
      %v259 = vpop.permute.xlu0 %258
      %260 = vrot.lane.b32.xlu0 %v251, 1
      %v261 = vpop.permute.xlu0 %260
      %262 = vrot.lane.b32.xlu0 %v252, 1
      %v263 = vpop.permute.xlu0 %262
      %264 = vrot.lane.b32.xlu0 %v253, 1
      %v265 = vpop.permute.xlu0 %264
      %266 = vrot.lane.b32.xlu0 %v254, 1
      %v267 = vpop.permute.xlu0 %266
      %268 = vrot.lane.b32.xlu0 %v255, 1
      %v269 = vpop.permute.xlu0 %268
      %270 = vrot.lane.b32.xlu0 %v256, 1
      %v271 = vpop.permute.xlu0 %270
      %272 = vrot.lane.b32.xlu0 %v257, 1
      %v273 = vpop.permute.xlu0 %272
      %vm274 = vcmp.gt.f32.partialorder %v259, %v157
      %vm275 = vcmp.gt.f32.partialorder %v261, %v157
      %vm276 = vcmp.gt.f32.partialorder %v263, %v157
      %vm277 = vcmp.gt.f32.partialorder %v265, %v157
      %vm278 = vcmp.gt.f32.partialorder %v267, %v157
      %vm279 = vcmp.gt.f32.partialorder %v269, %v157
      %vm280 = vcmp.gt.f32.partialorder %v271, %v157
      %vm281 = vcmp.gt.f32.partialorder %v273, %v157
      %v282 = vmul.f32 %v259, 0.25
      %v283 = vmul.f32 %v261, 0.25
      %v284 = vmul.f32 %v263, 0.25
      %v285 = vmul.f32 %v265, 0.25
      %v286 = vmul.f32 %v267, 0.25
      %v287 = vmul.f32 %v269, 0.25
      %v288 = vmul.f32 %v271, 0.25
      %v289 = vmul.f32 %v273, 0.25
      %v290 = vadd.f32 %v282, %v133
      %v291 = vadd.f32 %v283, %v134
      %v292 = vadd.f32 %v284, %v135
      %v293 = vadd.f32 %v285, %v136
      %v294 = vadd.f32 %v286, %v137
      %v295 = vadd.f32 %v287, %v138
      %v296 = vadd.f32 %v288, %v139
      %v297 = vadd.f32 %v289, %v140
      %v298 = vsel %vm274, %v133, %v290
      %v299 = vsel %vm275, %v134, %v291
      %v300 = vsel %vm276, %v135, %v292
      %v301 = vsel %vm277, %v136, %v293
      %v302 = vsel %vm278, %v137, %v294
      %v303 = vsel %vm279, %v138, %v295
      %v304 = vsel %vm280, %v139, %v296
      %v305 = vsel %vm281, %v140, %v297
      %v306 = vsel %vm128, 1, 0
      %vm307 = vcmp.eq.s32.totalorder %v306, 1
      %v308 = vsel %vm307, %v298, %v250
      %v309 = vsel %vm307, %v299, %v251
      %v310 = vsel %vm307, %v300, %v252
      %v311 = vsel %vm307, %v301, %v253
      %v312 = vsel %vm307, %v302, %v254
      %v313 = vsel %vm307, %v303, %v255
      %v314 = vsel %vm307, %v304, %v256
      %v315 = vsel %vm307, %v305, %v257
      %316 = vrot.lane.b32.xlu0 %v308, 1
      %v317 = vpop.permute.xlu0 %316
      %318 = vrot.lane.b32.xlu0 %v309, 1
      %v319 = vpop.permute.xlu0 %318
      %320 = vrot.lane.b32.xlu0 %v310, 1
      %v321 = vpop.permute.xlu0 %320
      %322 = vrot.lane.b32.xlu0 %v311, 1
      %v323 = vpop.permute.xlu0 %322
      %324 = vrot.lane.b32.xlu0 %v312, 1
      %v325 = vpop.permute.xlu0 %324
      %326 = vrot.lane.b32.xlu0 %v313, 1
      %v327 = vpop.permute.xlu0 %326
      %328 = vrot.lane.b32.xlu0 %v314, 1
      %v329 = vpop.permute.xlu0 %328
      %330 = vrot.lane.b32.xlu0 %v315, 1
      %v331 = vpop.permute.xlu0 %330
      %vm332 = vcmp.gt.f32.partialorder %v317, %v157
      %vm333 = vcmp.gt.f32.partialorder %v319, %v157
      %vm334 = vcmp.gt.f32.partialorder %v321, %v157
      %vm335 = vcmp.gt.f32.partialorder %v323, %v157
      %vm336 = vcmp.gt.f32.partialorder %v325, %v157
      %vm337 = vcmp.gt.f32.partialorder %v327, %v157
      %vm338 = vcmp.gt.f32.partialorder %v329, %v157
      %vm339 = vcmp.gt.f32.partialorder %v331, %v157
      %v340 = vmul.f32 %v317, 0.25
      %v341 = vmul.f32 %v319, 0.25
      %v342 = vmul.f32 %v321, 0.25
      %v343 = vmul.f32 %v323, 0.25
      %v344 = vmul.f32 %v325, 0.25
      %v345 = vmul.f32 %v327, 0.25
      %v346 = vmul.f32 %v329, 0.25
      %v347 = vmul.f32 %v331, 0.25
      %v348 = vadd.f32 %v340, %v133
      %v349 = vadd.f32 %v341, %v134
      %v350 = vadd.f32 %v342, %v135
      %v351 = vadd.f32 %v343, %v136
      %v352 = vadd.f32 %v344, %v137
      %v353 = vadd.f32 %v345, %v138
      %v354 = vadd.f32 %v346, %v139
      %v355 = vadd.f32 %v347, %v140
      %v356 = vsel %vm332, %v133, %v348
      %v357 = vsel %vm333, %v134, %v349
      %v358 = vsel %vm334, %v135, %v350
      %v359 = vsel %vm335, %v136, %v351
      %v360 = vsel %vm336, %v137, %v352
      %v361 = vsel %vm337, %v138, %v353
      %v362 = vsel %vm338, %v139, %v354
      %v363 = vsel %vm339, %v140, %v355
      %v364 = vsel %vm129, 1, 0
      %vm365 = vcmp.eq.s32.totalorder %v364, 1
      %v366 = vsel %vm365, %v356, %v308
      %v367 = vsel %vm365, %v357, %v309
      %v368 = vsel %vm365, %v358, %v310
      %v369 = vsel %vm365, %v359, %v311
      %v370 = vsel %vm365, %v360, %v312
      %v371 = vsel %vm365, %v361, %v313
      %v372 = vsel %vm365, %v362, %v314
      %v373 = vsel %vm365, %v363, %v315
      %374 = vrot.lane.b32.xlu0 %v366, 1
      %v375 = vpop.permute.xlu0 %374
      %376 = vrot.lane.b32.xlu0 %v367, 1
      %v377 = vpop.permute.xlu0 %376
      %378 = vrot.lane.b32.xlu0 %v368, 1
      %v379 = vpop.permute.xlu0 %378
      %380 = vrot.lane.b32.xlu0 %v369, 1
      %v381 = vpop.permute.xlu0 %380
      %382 = vrot.lane.b32.xlu0 %v370, 1
      %v383 = vpop.permute.xlu0 %382
      %384 = vrot.lane.b32.xlu0 %v371, 1
      %v385 = vpop.permute.xlu0 %384
      %386 = vrot.lane.b32.xlu0 %v372, 1
      %v387 = vpop.permute.xlu0 %386
      %388 = vrot.lane.b32.xlu0 %v373, 1
      %v389 = vpop.permute.xlu0 %388
      %vm390 = vcmp.gt.f32.partialorder %v375, %v157
      %vm391 = vcmp.gt.f32.partialorder %v377, %v157
      %vm392 = vcmp.gt.f32.partialorder %v379, %v157
      %vm393 = vcmp.gt.f32.partialorder %v381, %v157
      %vm394 = vcmp.gt.f32.partialorder %v383, %v157
      %vm395 = vcmp.gt.f32.partialorder %v385, %v157
      %vm396 = vcmp.gt.f32.partialorder %v387, %v157
      %vm397 = vcmp.gt.f32.partialorder %v389, %v157
      %v398 = vmul.f32 %v375, 0.25
      %v399 = vmul.f32 %v377, 0.25
      %v400 = vmul.f32 %v379, 0.25
      %v401 = vmul.f32 %v381, 0.25
      %v402 = vmul.f32 %v383, 0.25
      %v403 = vmul.f32 %v385, 0.25
      %v404 = vmul.f32 %v387, 0.25
      %v405 = vmul.f32 %v389, 0.25
      %v406 = vadd.f32 %v398, %v133
      %v407 = vadd.f32 %v399, %v134
      %v408 = vadd.f32 %v400, %v135
      %v409 = vadd.f32 %v401, %v136
      %v410 = vadd.f32 %v402, %v137
      %v411 = vadd.f32 %v403, %v138
      %v412 = vadd.f32 %v404, %v139
      %v413 = vadd.f32 %v405, %v140
      %v414 = vsel %vm390, %v133, %v406
      %v415 = vsel %vm391, %v134, %v407
      %v416 = vsel %vm392, %v135, %v408
      %v417 = vsel %vm393, %v136, %v409
      %v418 = vsel %vm394, %v137, %v410
      %v419 = vsel %vm395, %v138, %v411
      %v420 = vsel %vm396, %v139, %v412
      %v421 = vsel %vm397, %v140, %v413
      %v422 = vsel %vm130, 1, 0
      %vm423 = vcmp.eq.s32.totalorder %v422, 1
      %v424 = vsel %vm423, %v414, %v366
      %v425 = vsel %vm423, %v415, %v367
      %v426 = vsel %vm423, %v416, %v368
      %v427 = vsel %vm423, %v417, %v369
      %v428 = vsel %vm423, %v418, %v370
      %v429 = vsel %vm423, %v419, %v371
      %v430 = vsel %vm423, %v420, %v372
      %v431 = vsel %vm423, %v421, %v373
      %432 = vrot.lane.b32.xlu0 %v424, 1
      %v433 = vpop.permute.xlu0 %432
      %434 = vrot.lane.b32.xlu0 %v425, 1
      %v435 = vpop.permute.xlu0 %434
      %436 = vrot.lane.b32.xlu0 %v426, 1
      %v437 = vpop.permute.xlu0 %436
      %438 = vrot.lane.b32.xlu0 %v427, 1
      %v439 = vpop.permute.xlu0 %438
      %440 = vrot.lane.b32.xlu0 %v428, 1
      %v441 = vpop.permute.xlu0 %440
      %442 = vrot.lane.b32.xlu0 %v429, 1
      %v443 = vpop.permute.xlu0 %442
      %444 = vrot.lane.b32.xlu0 %v430, 1
      %v445 = vpop.permute.xlu0 %444
      %446 = vrot.lane.b32.xlu0 %v431, 1
      %v447 = vpop.permute.xlu0 %446
      %vm448 = vcmp.gt.f32.partialorder %v433, %v157
      %vm449 = vcmp.gt.f32.partialorder %v435, %v157
      %vm450 = vcmp.gt.f32.partialorder %v437, %v157
      %vm451 = vcmp.gt.f32.partialorder %v439, %v157
      %vm452 = vcmp.gt.f32.partialorder %v441, %v157
      %vm453 = vcmp.gt.f32.partialorder %v443, %v157
      %vm454 = vcmp.gt.f32.partialorder %v445, %v157
      %vm455 = vcmp.gt.f32.partialorder %v447, %v157
      %v456 = vmul.f32 %v433, 0.25
      %v457 = vmul.f32 %v435, 0.25
      %v458 = vmul.f32 %v437, 0.25
      %v459 = vmul.f32 %v439, 0.25
      %v460 = vmul.f32 %v441, 0.25
      %v461 = vmul.f32 %v443, 0.25
      %v462 = vmul.f32 %v445, 0.25
      %v463 = vmul.f32 %v447, 0.25
      %v464 = vadd.f32 %v456, %v133
      %v465 = vadd.f32 %v457, %v134
      %v466 = vadd.f32 %v458, %v135
      %v467 = vadd.f32 %v459, %v136
      %v468 = vadd.f32 %v460, %v137
      %v469 = vadd.f32 %v461, %v138
      %v470 = vadd.f32 %v462, %v139
      %v471 = vadd.f32 %v463, %v140
      %v472 = vsel %vm448, %v133, %v464
      %v473 = vsel %vm449, %v134, %v465
      %v474 = vsel %vm450, %v135, %v466
      %v475 = vsel %vm451, %v136, %v467
      %v476 = vsel %vm452, %v137, %v468
      %v477 = vsel %vm453, %v138, %v469
      %v478 = vsel %vm454, %v139, %v470
      %v479 = vsel %vm455, %v140, %v471
      %v480 = vsel %vm131, 1, 0
      %vm481 = vcmp.eq.s32.totalorder %v480, 1
      %v482 = vsel %vm481, %v472, %v424
      %v483 = vsel %vm481, %v473, %v425
      %v484 = vsel %vm481, %v474, %v426
      %v485 = vsel %vm481, %v475, %v427
      %v486 = vsel %vm481, %v476, %v428
      %v487 = vsel %vm481, %v477, %v429
      %v488 = vsel %vm481, %v478, %v430
      %v489 = vsel %vm481, %v479, %v431
      %490 = vrot.lane.b32.xlu0 %v482, 1
      %v491 = vpop.permute.xlu0 %490
      %492 = vrot.lane.b32.xlu0 %v483, 1
      %v493 = vpop.permute.xlu0 %492
      %494 = vrot.lane.b32.xlu0 %v484, 1
      %v495 = vpop.permute.xlu0 %494
      %496 = vrot.lane.b32.xlu0 %v485, 1
      %v497 = vpop.permute.xlu0 %496
      %498 = vrot.lane.b32.xlu0 %v486, 1
      %v499 = vpop.permute.xlu0 %498
      %500 = vrot.lane.b32.xlu0 %v487, 1
      %v501 = vpop.permute.xlu0 %500
      %502 = vrot.lane.b32.xlu0 %v488, 1
      %v503 = vpop.permute.xlu0 %502
      %504 = vrot.lane.b32.xlu0 %v489, 1
      %v505 = vpop.permute.xlu0 %504
      %vm506 = vcmp.gt.f32.partialorder %v491, %v157
      %vm507 = vcmp.gt.f32.partialorder %v493, %v157
      %vm508 = vcmp.gt.f32.partialorder %v495, %v157
      %vm509 = vcmp.gt.f32.partialorder %v497, %v157
      %vm510 = vcmp.gt.f32.partialorder %v499, %v157
      %vm511 = vcmp.gt.f32.partialorder %v501, %v157
      %vm512 = vcmp.gt.f32.partialorder %v503, %v157
      %vm513 = vcmp.gt.f32.partialorder %v505, %v157
      %v514 = vmul.f32 %v491, 0.25
      %v515 = vmul.f32 %v493, 0.25
      %v516 = vmul.f32 %v495, 0.25
      %v517 = vmul.f32 %v497, 0.25
      %v518 = vmul.f32 %v499, 0.25
      %v519 = vmul.f32 %v501, 0.25
      %v520 = vmul.f32 %v503, 0.25
      %v521 = vmul.f32 %v505, 0.25
      %v522 = vadd.f32 %v514, %v133
      %v523 = vadd.f32 %v515, %v134
      %v524 = vadd.f32 %v516, %v135
      %v525 = vadd.f32 %v517, %v136
      %v526 = vadd.f32 %v518, %v137
      %v527 = vadd.f32 %v519, %v138
      %v528 = vadd.f32 %v520, %v139
      %v529 = vadd.f32 %v521, %v140
      %v530 = vsel %vm506, %v133, %v522
      %v531 = vsel %vm507, %v134, %v523
      %v532 = vsel %vm508, %v135, %v524
      %v533 = vsel %vm509, %v136, %v525
      %v534 = vsel %vm510, %v137, %v526
      %v535 = vsel %vm511, %v138, %v527
      %v536 = vsel %vm512, %v139, %v528
      %v537 = vsel %vm513, %v140, %v529
      %v538 = vsel %vm132, 1, 0
      %vm539 = vcmp.eq.s32.totalorder %v538, 1
      %v540 = vsel %vm539, %v530, %v482
      %v541 = vsel %vm539, %v531, %v483
      %v542 = vsel %vm539, %v532, %v484
      %v543 = vsel %vm539, %v533, %v485
      %v544 = vsel %vm539, %v534, %v486
      %v545 = vsel %vm539, %v535, %v487
      %v546 = vsel %vm539, %v536, %v488
      %v547 = vsel %vm539, %v537, %v489
      %vm548 = vcmp.gt.f32.partialorder %v540, %v157
      %vm549 = vcmp.gt.f32.partialorder %v541, %v157
      %vm550 = vcmp.gt.f32.partialorder %v542, %v157
      %vm551 = vcmp.gt.f32.partialorder %v543, %v157
      %vm552 = vcmp.gt.f32.partialorder %v544, %v157
      %vm553 = vcmp.gt.f32.partialorder %v545, %v157
      %vm554 = vcmp.gt.f32.partialorder %v546, %v157
      %vm555 = vcmp.gt.f32.partialorder %v547, %v157
      %v556 = vsel %vm548, 1, 0
      %v557 = vsel %vm549, 1, 0
      %v558 = vsel %vm550, 1, 0
      %v559 = vsel %vm551, 1, 0
      %v560 = vsel %vm552, 1, 0
      %v561 = vsel %vm553, 1, 0
      %v562 = vsel %vm554, 1, 0
      %v563 = vsel %vm555, 1, 0
      %v564 = vcvt.s32.f32 %v556
      %v565 = vcvt.s32.f32 %v557
      %v566 = vcvt.s32.f32 %v558
      %v567 = vcvt.s32.f32 %v559
      %v568 = vcvt.s32.f32 %v560
      %v569 = vcvt.s32.f32 %v561
      %v570 = vcvt.s32.f32 %v562
      %v571 = vcvt.s32.f32 %v563
      %572 = vst [vmem:[%s120] sm:$0xff] %v564
      %573 = vst [vmem:[%s120 + $0x8] sm:$0xff] %v565
      %574 = vst [vmem:[%s120 + $0x10] sm:$0xff] %v566
      %575 = vst [vmem:[%s120 + $0x18] sm:$0xff] %v567
      %576 = vst [vmem:[%s120 + $0x20] sm:$0xff] %v568
      %577 = vst [vmem:[%s120 + $0x28] sm:$0xff] %v569
      %578 = vst [vmem:[%s120 + $0x30] sm:$0xff] %v570
      %579 = vst [vmem:[%s120 + $0x38] sm:$0xff] %v571
      %s580 = smul.u32 8, %s14
      %p581 = scmp.lt.s32.totalorder %s580, 15
      %s582 = scalar_select %p581, %s580, 15
      %s583 = smul.addr %s582, 8
      %s584 = scalar_lea.vmem %s2, %s583
      // Predicated region
      $region25: #{my_lif_spike.1} parent=23 // pred_check
        %p585 = pneg %p58
      $region26: #{my_lif_spike.1} parent=23 // pred_check_branch
        %587 = sbr.rel (%p585) target = $region28
      $region27: #{my_lif_spike.1} parent=23 // pred_region
        %s588 = smul.u32 8, %s14
      $region28: #{my_lif_spike.1} parent=23 // pred_fallthru
        _
    $region24: #{my_lif_spike.1} parent=5 // pred_fallthru
      _
    %p589 = scmp.le.s32.totalorder 2, %s9
    // Predicated region
    $region29: #{my_lif_spike.1} parent=5 // pred_check
      %p590 = pneg %p589
    $region30: #{my_lif_spike.1} parent=5 // pred_check_branch
      %592 = sbr.rel (%p590) target = $region32
    $region31: #{my_lif_spike.1} parent=5 // pred_region
      %s593 = ssub.s32 %s9, 2
      // Predicated region
      $region33: #{my_lif_spike.1} parent=31 // pred_check
        %p594 = pneg %p64
      $region34: #{my_lif_spike.1} parent=31 // pred_check_branch
        %596 = sbr.rel (%p594) target = $region36
      $region35: #{my_lif_spike.1} parent=31 // pred_region
        %s597 = smul.u32 8, %s15
        %p598 = scmp.lt.s32.totalorder %s597, 15
        %s599 = scalar_select %p598, %s597, 15
        %s600 = smul.addr %s599, 8
        %s601 = scalar_lea.vmem %s2, %s600
      $region36: #{my_lif_spike.1} parent=31 // pred_fallthru
        _
    $region32: #{my_lif_spike.1} parent=5 // pred_fallthru
      _
  $region6: #{my_lif_spike.1} parent=0 // loop_footer
    %s13 = sadd.s32 1, %s9
  $region7: #{my_lif_spike.1} parent=0 // loop_footer_branch
    %8 = sbr.rel target = $region3
  $region8: #{my_lif_spike.1} parent=0 // loop_exit
    _

</llo_original>
